<compile_context>
chip_gen: v5e
topology: v5e:2x2
jax: 0.10.0
libtpu: 0.0.40
codegen_flags: <defaults>
</compile_context>

<pallas_src>
import jax
import jax.numpy as jnp
import numpy as np
from jax.experimental import pallas as pl
from jax.experimental.pallas import tpu as pltpu


def _round_up(x, m):
    return (x + m - 1) // m * m


def csa_kernel(x_ref, wf_ref, cg_ref, b_ref, out_ref, spg_ref):
    xf = x_ref[...].astype(jnp.float32)                                # (C, TH)

    # Single fused skinny matmul (replaces 3 separate MXU passes):
    #   row 0     = ws.T                      -> spatial-gate logit (pre-bias)
    #   rows 1..2 = (ch_gate ⊙ wg[:C]).T      -> channel_out @ wg_c
    #   rows 3..4 = wg[C:].T                  -> x @ wg_s  (scaled by sp_gate below)
    z = jnp.dot(wf_ref[...], xf, preferred_element_type=jnp.float32)  # (8, TH)

    # spatial gate (stand-in for MoE spatial experts)
    sp_gate = jax.nn.sigmoid(z[0:1, :] + b_ref[0])                     # (1, TH)

    # gate_c / gate_s 1x1-conv logits over cat([channel_out, spatial_out], C)
    lc = z[1:2, :] + sp_gate * z[3:4, :] + b_ref[1]                    # (1, TH)
    ls = z[2:3, :] + sp_gate * z[4:5, :] + b_ref[2]                    # (1, TH)

    # stable pairwise 2-way softmax — EXACT reciprocal (kernel is HBM-bound,
    # the exact path is free in wall-clock and keeps full f32 accuracy).
    m = jnp.maximum(lc, ls)
    ec = jnp.exp(lc - m)
    es = jnp.exp(ls - m)
    inv = pl.reciprocal(ec + es, approx=False)
    att_c = ec * inv
    att_s = es * inv

    # out = channel_out*att_c + spatial_out*att_s
    #     = x * (ch_gate ⊗ att_c + sp_gate * att_s)
    g = cg_ref[...] * att_c + att_s * sp_gate                          # (C,TH)
    out_ref[...] = (xf * g).astype(out_ref.dtype)

    # emit sp_gate so the wrapper's aux loss never re-reads x
    spg_ref[...] = sp_gate.astype(spg_ref.dtype)


def _tpu_budget():
    """Return (TH lane cap, vmem_limit_bytes), gated on physical VMEM.

    v7x has 64 MiB VMEM per TensorCore -> cap TH at 4096 and scope 40 MiB;
    v5e / v6e (128 MiB) take an 8192-lane tile with a 64 MiB scope.
    """
    try:
        vmem = int(pltpu.get_tpu_info().vmem_capacity_bytes)
    except Exception:  # unknown target: be conservative (v7x-like)
        vmem = 64 * 1024 * 1024
    if vmem <= 64 * 1024 * 1024:
        return 4096, 40 * 1024 * 1024
    return 8192, 64 * 1024 * 1024


def _plan_hw_tiling(hw, cap):
    """Pick (hw_pad, th): th a 128-multiple <= cap with hw_pad % th == 0.

    Guarantees lane-dense, unmasked stores; never falls back to a monolithic
    block that could overflow VMEM.
    """
    if hw <= cap:
        th = _round_up(hw, 128)
        return th, th
    hw128 = _round_up(hw, 128)
    for th in (cap, cap // 2, cap // 4, cap // 8):
        if hw128 % th == 0:
            return hw128, th
    # No nice power-of-two divisor: pad a little further and use 1024-lane tiles.
    return _round_up(hw, 1024), 1024


def csa_forward(x_nchw, audio_feat, params):
    bs, C, H, W = x_nchw.shape
    HW = H * W
    x = x_nchw.reshape(bs, C, HW)                 # free reshape, stays channel-major
    a = jnp.mean(audio_feat, axis=1)              # (bs, C)

    wc, bc, ws, bsp, wg, bg = (params[k] for k in ("wc", "bc", "ws", "bsp", "wg", "bg"))

    # Hoisted channel gate (stand-in for MoE channel experts); reused for aux loss.
    ch_gate = jax.nn.sigmoid(a @ wc + bc)         # (bs, C)

    # Fused per-batch weight (bs, 8, C) — tiny, built in XLA.
    wg_c = wg[:C]                                 # (C, 2)
    wg_s = wg[C:]                                 # (C, 2)
    row0 = jnp.broadcast_to(ws.T[None], (bs, 1, C))                     # ws.T
    rows_c = jnp.einsum("bc,cj->bjc", ch_gate, wg_c)                    # (ch_gate ⊙ wg_c).T
    rows_s = jnp.broadcast_to(wg_s.T[None], (bs, 2, C))                 # wg_s.T
    pad = jnp.zeros((bs, 3, C), jnp.float32)
    wf = jnp.concatenate([row0, rows_c, rows_s, pad], axis=1).astype(jnp.float32)  # (bs, 8, C)

    # scalar biases packed for SMEM: [bsp, bg_c, bg_s]
    biases = jnp.concatenate([bsp.reshape(-1), bg.reshape(-1)]).astype(jnp.float32)  # (3,)

    cap, vmem_limit = _tpu_budget()
    HW_pad, TH = _plan_hw_tiling(HW, cap)
    n_th = HW_pad // TH
    # v7x megacore occupancy: make sure the grid has >= 2 steps.
    if bs * n_th < 2 and TH >= 256 and (TH // 2) % 128 == 0:
        TH //= 2
        n_th = HW_pad // TH

    if HW_pad != HW:
        # Pad lanes so every tile store is an unmasked, 128-multiple vst.
        x_k = jnp.pad(x, ((0, 0), (0, 0), (0, HW_pad - HW)))
    else:
        x_k = x

    itemsize = jnp.dtype(x.dtype).itemsize
    cost = pl.CostEstimate(
        flops=int(bs * HW_pad * (2 * 8 * C + 6 * C + 16)),
        transcendentals=int(bs * HW_pad * 4),
        bytes_accessed=int(2 * bs * C * HW_pad * itemsize      # x read + out write
                           + bs * HW_pad * 4                   # sp_gate write
                           + bs * (8 * C + C + 3) * 4),        # wf, ch_gate, biases
    )

    out, sp_gate = pl.pallas_call(
        csa_kernel,
        out_shape=(
            jax.ShapeDtypeStruct((bs, C, HW_pad), x.dtype),     # keeps caller dtype (bf16 ok)
            jax.ShapeDtypeStruct((bs, 1, HW_pad), jnp.float32),
        ),
        grid_spec=pltpu.PrefetchScalarGridSpec(
            num_scalar_prefetch=0,
            grid=(bs, n_th),
            in_specs=[
                pl.BlockSpec((None, C, TH), lambda b, t: (b, 0, t)),        # x tile
                pl.BlockSpec((None, 8, C), lambda b, t: (b, 0, 0)),         # fused weights
                pl.BlockSpec((None, C, 1), lambda b, t: (b, 0, 0)),         # channel gate
                pl.BlockSpec(memory_space=pltpu.MemorySpace.SMEM),          # biases (3,)
            ],
            out_specs=(
                pl.BlockSpec((None, C, TH), lambda b, t: (b, 0, t)),        # fused output
                pl.BlockSpec((None, 1, TH), lambda b, t: (b, 0, t)),        # sp_gate (aux loss)
            ),
        ),
        compiler_params=pltpu.CompilerParams(
            dimension_semantics=("parallel", "parallel"),
            vmem_limit_bytes=vmem_limit),
        cost_estimate=cost,
    )(x_k, wf, ch_gate[..., None], biases)

    if HW_pad != HW:
        out = out[:, :, :HW]
        sp_gate = sp_gate[:, :, :HW]
    out_nchw = out.reshape(bs, C, H, W)           # free reshape

    # stand-in aux losses (loss_coef = 0.01 as in the module config) — no extra pass over x
    loss_coef = 0.01
    loss_c = loss_coef * jnp.mean(ch_gate ** 2)
    loss_s = loss_coef * jnp.mean(sp_gate ** 2)
    return out_nchw, (loss_c + loss_s) / 2.0


def csa_reference(x_nchw, audio_feat, p):
    """Pure-JAX reference of the same computation (for correctness check)."""
    bs, C, H, W = x_nchw.shape
    x = jnp.transpose(x_nchw, (0, 2, 3, 1)).reshape(bs, H * W, C)
    a = jnp.mean(audio_feat, axis=1, keepdims=True)
    ch_gate = jax.nn.sigmoid(jnp.einsum("boc,cd->bod", a, p["wc"]) + p["bc"])
    channel_out = x * ch_gate
    sp_gate = jax.nn.sigmoid(x @ p["ws"] + p["bsp"])
    spatial_out = x * sp_gate
    cat = jnp.concatenate([channel_out, spatial_out], axis=-1)
    logits = cat @ p["wg"] + p["bg"]
    att = jax.nn.softmax(logits, axis=-1)
    out = channel_out * att[..., 0:1] + spatial_out * att[..., 1:2]
    out = jnp.transpose(out.reshape(bs, H, W, C), (0, 3, 1, 2))
    loss_c = 0.01 * jnp.mean(ch_gate ** 2)
    loss_s = 0.01 * jnp.mean(sp_gate ** 2)
    return out, (loss_c + loss_s) / 2.0


if __name__ == "__main__":
    bs, C, H, W = 2, 256, 8, 8      # embed_dim=256 as in the module spec; small spatial
    n_audio = 4

    key = jax.random.PRNGKey(0)
    k = jax.random.split(key, 8)
    params = {
        "wc":  jax.random.normal(k[0], (C, C), jnp.float32) * 0.05,
        "bc":  jax.random.normal(k[1], (1, C), jnp.float32) * 0.05,
        "ws":  jax.random.normal(k[2], (C, 1), jnp.float32) * 0.05,
        "bsp": jax.random.normal(k[3], (1, 1), jnp.float32) * 0.05,
        "wg":  jax.random.normal(k[4], (2 * C, 2), jnp.float32) * 0.05,  # gate_c / gate_s 1x1-conv
        "bg":  jax.random.normal(k[5], (1, 2), jnp.float32) * 0.05,
    }
    x = jax.random.normal(k[6], (bs, C, H, W), jnp.float32)
    audio_feat = jax.random.normal(k[7], (bs, n_audio, C), jnp.float32)

    out, loss = csa_forward(x, audio_feat, params)
    out = jax.block_until_ready(out)
    loss = jax.block_until_ready(loss)

    ref_out, ref_loss = csa_reference(x, audio_feat, params)
    # Exact softmax reciprocal now: only matmul-order / MXU-rounding differences remain.
    np.testing.assert_allclose(np.asarray(out), np.asarray(ref_out), rtol=1e-3, atol=1e-4)
    np.testing.assert_allclose(np.asarray(loss), np.asarray(ref_loss), rtol=1e-4, atol=1e-6)

    print("KERNEL_OK")
</pallas_src>

<mosaic_0001>
module attributes {stable_mosaic.version = 11 : i64} {
  func.func @csa_kernel(%arg0: i32, %arg1: i32, %arg2: memref<1x256x128xf32, #tpu.memory_space<vmem>>, %arg3: memref<1x8x256xf32, #tpu.memory_space<vmem>>, %arg4: memref<1x256x1xf32, #tpu.memory_space<vmem>>, %arg5: memref<3xf32, #tpu.memory_space<smem>>, %arg6: memref<1x256x128xf32, #tpu.memory_space<vmem>>, %arg7: memref<1x1x128xf32, #tpu.memory_space<vmem>>) attributes {dimension_semantics = [#tpu.dimension_semantics<parallel>, #tpu.dimension_semantics<parallel>], iteration_bounds = array<i64: 2, 1>, scalar_prefetch = 0 : i64, scratch_operands = 0 : i64, tpu.core_type = #tpu.core_type<tc>, window_params = [{transform_indices = @transform_0, window_bounds = array<i64: 1, 256, 128>}, {transform_indices = @transform_1, window_bounds = array<i64: 1, 8, 256>}, {transform_indices = @transform_2, window_bounds = array<i64: 1, 256, 1>}, {transform_indices = @transform_3, window_bounds = array<i64: 3>}, {transform_indices = @transform_4, window_bounds = array<i64: 1, 256, 128>}, {transform_indices = @transform_5, window_bounds = array<i64: 1, 1, 128>}]} {
    %c0 = arith.constant 0 : index
    %c0_0 = arith.constant 0 : index
    %c0_1 = arith.constant 0 : index
    %0 = vector.load %arg2[%c0, %c0_0, %c0_1] : memref<1x256x128xf32, #tpu.memory_space<vmem>>, vector<1x256x128xf32>
    %1 = vector.shape_cast %0 : vector<1x256x128xf32> to vector<256x128xf32>
    %c0_2 = arith.constant 0 : index
    %c0_3 = arith.constant 0 : index
    %c0_4 = arith.constant 0 : index
    %2 = vector.load %arg3[%c0_2, %c0_3, %c0_4] : memref<1x8x256xf32, #tpu.memory_space<vmem>>, vector<1x8x256xf32>
    %3 = vector.shape_cast %2 : vector<1x8x256xf32> to vector<8x256xf32>
    %cst = arith.constant dense<0.000000e+00> : vector<8x128xf32>
    %4 = tpu.matmul %3, %1, %cst {dimension_numbers = #tpu.dot_dimension_numbers<[1], [0], [0], [1], [0, 0, 1, 1], [], []>} : vector<8x256xf32>, vector<256x128xf32>, vector<8x128xf32> -> vector<8x128xf32>
    %5 = vector.extract_strided_slice %4 {offsets = [0, 0], sizes = [1, 128], strides = [1, 1]} : vector<8x128xf32> to vector<1x128xf32>
    %c0_5 = arith.constant 0 : index
    %6 = memref.load %arg5[%c0_5] : memref<3xf32, #tpu.memory_space<smem>>
    %7 = vector.broadcast %6 : f32 to vector<1x128xf32>
    %8 = arith.addf %5, %7 : vector<1x128xf32>
    %9 = arith.negf %8 : vector<1x128xf32>
    %10 = math.exp %9 : vector<1x128xf32>
    %cst_6 = arith.constant 1.000000e+00 : f32
    %11 = vector.broadcast %cst_6 : f32 to vector<1x128xf32>
    %12 = arith.addf %11, %10 : vector<1x128xf32>
    %13 = arith.divf %11, %12 : vector<1x128xf32>
    %14 = vector.extract_strided_slice %4 {offsets = [1, 0], sizes = [1, 128], strides = [1, 1]} : vector<8x128xf32> to vector<1x128xf32>
    %15 = vector.extract_strided_slice %4 {offsets = [3, 0], sizes = [1, 128], strides = [1, 1]} : vector<8x128xf32> to vector<1x128xf32>
    %16 = arith.mulf %13, %15 : vector<1x128xf32>
    %17 = arith.addf %14, %16 : vector<1x128xf32>
    %c1 = arith.constant 1 : index
    %18 = memref.load %arg5[%c1] : memref<3xf32, #tpu.memory_space<smem>>
    %19 = vector.broadcast %18 : f32 to vector<1x128xf32>
    %20 = arith.addf %17, %19 : vector<1x128xf32>
    %21 = vector.extract_strided_slice %4 {offsets = [2, 0], sizes = [1, 128], strides = [1, 1]} : vector<8x128xf32> to vector<1x128xf32>
    %22 = vector.extract_strided_slice %4 {offsets = [4, 0], sizes = [1, 128], strides = [1, 1]} : vector<8x128xf32> to vector<1x128xf32>
    %23 = arith.mulf %13, %22 : vector<1x128xf32>
    %24 = arith.addf %21, %23 : vector<1x128xf32>
    %c2 = arith.constant 2 : index
    %25 = memref.load %arg5[%c2] : memref<3xf32, #tpu.memory_space<smem>>
    %26 = vector.broadcast %25 : f32 to vector<1x128xf32>
    %27 = arith.addf %24, %26 : vector<1x128xf32>
    %28 = arith.maximumf %20, %27 : vector<1x128xf32>
    %29 = arith.subf %20, %28 : vector<1x128xf32>
    %30 = math.exp %29 : vector<1x128xf32>
    %31 = arith.subf %27, %28 : vector<1x128xf32>
    %32 = math.exp %31 : vector<1x128xf32>
    %33 = arith.addf %30, %32 : vector<1x128xf32>
    %34 = tpu.reciprocal %33 : vector<1x128xf32> -> vector<1x128xf32>
    %35 = arith.mulf %30, %34 : vector<1x128xf32>
    %36 = arith.mulf %32, %34 : vector<1x128xf32>
    %c0_7 = arith.constant 0 : index
    %c0_8 = arith.constant 0 : index
    %c0_9 = arith.constant 0 : index
    %37 = vector.load %arg4[%c0_7, %c0_8, %c0_9] : memref<1x256x1xf32, #tpu.memory_space<vmem>>, vector<1x256x1xf32>
    %38 = vector.shape_cast %37 : vector<1x256x1xf32> to vector<256x1xf32>
    %39 = vector.broadcast %38 : vector<256x1xf32> to vector<256x128xf32>
    %40 = vector.broadcast %35 : vector<1x128xf32> to vector<256x128xf32>
    %41 = arith.mulf %39, %40 : vector<256x128xf32>
    %42 = arith.mulf %36, %13 : vector<1x128xf32>
    %43 = vector.broadcast %42 : vector<1x128xf32> to vector<256x128xf32>
    %44 = arith.addf %41, %43 : vector<256x128xf32>
    %45 = arith.mulf %1, %44 : vector<256x128xf32>
    %c0_10 = arith.constant 0 : index
    %c0_11 = arith.constant 0 : index
    %c0_12 = arith.constant 0 : index
    %46 = vector.load %arg6[%c0_10, %c0_11, %c0_12] : memref<1x256x128xf32, #tpu.memory_space<vmem>>, vector<1x256x128xf32>
    %47 = vector.shape_cast %46 : vector<1x256x128xf32> to vector<256x128xf32>
    %48 = vector.shape_cast %45 : vector<256x128xf32> to vector<1x256x128xf32>
    tpu.vector_store %arg6[%c0_10, %c0_11, %c0_12], %48 {strides = array<i32>} : memref<1x256x128xf32, #tpu.memory_space<vmem>>, vector<1x256x128xf32>,
    %c0_13 = arith.constant 0 : index
    %c0_14 = arith.constant 0 : index
    %c0_15 = arith.constant 0 : index
    %49 = vector.load %arg7[%c0_13, %c0_14, %c0_15] : memref<1x1x128xf32, #tpu.memory_space<vmem>>, vector<1x1x128xf32>
    %50 = vector.shape_cast %49 : vector<1x1x128xf32> to vector<1x128xf32>
    %51 = vector.shape_cast %13 : vector<1x128xf32> to vector<1x1x128xf32>
    tpu.vector_store %arg7[%c0_13, %c0_14, %c0_15], %51 {strides = array<i32>} : memref<1x1x128xf32, #tpu.memory_space<vmem>>, vector<1x1x128xf32>,
    return
  }
  func.func @transform_0(%arg0: i32, %arg1: i32) -> (i32, i32, i32) {
    %c0_i32 = arith.constant 0 : i32
    %c0_i32_0 = arith.constant 0 : i32
    return %arg0, %c0_i32, %arg1 : i32, i32, i32
  }
  func.func @transform_1(%arg0: i32, %arg1: i32) -> (i32, i32, i32) {
    %c0_i32 = arith.constant 0 : i32
    %c0_i32_0 = arith.constant 0 : i32
    %c0_i32_1 = arith.constant 0 : i32
    return %arg0, %c0_i32, %c0_i32_0 : i32, i32, i32
  }
  func.func @transform_2(%arg0: i32, %arg1: i32) -> (i32, i32, i32) {
    %c0_i32 = arith.constant 0 : i32
    %c0_i32_0 = arith.constant 0 : i32
    %c0_i32_1 = arith.constant 0 : i32
    return %arg0, %c0_i32, %c0_i32_0 : i32, i32, i32
  }
  func.func @transform_3(%arg0: i32, %arg1: i32) -> i32 {
    %c0_i32 = arith.constant 0 : i32
    %c0_i32_0 = arith.constant 0 : i32
    return %c0_i32 : i32
  }
  func.func @transform_4(%arg0: i32, %arg1: i32) -> (i32, i32, i32) {
    %c0_i32 = arith.constant 0 : i32
    %c0_i32_0 = arith.constant 0 : i32
    return %arg0, %c0_i32, %arg1 : i32, i32, i32
  }
  func.func @transform_5(%arg0: i32, %arg1: i32) -> (i32, i32, i32) {
    %c0_i32 = arith.constant 0 : i32
    %c0_i32_0 = arith.constant 0 : i32
    return %arg0, %c0_i32, %arg1 : i32, i32, i32
  }
}

</mosaic_0001>

<llo_original>
// kernel: tpu_custom_call.1
$region0: #{tpu_custom_call.1}
  #allocation0 [shape = 'u32[]', space=smem, size = 0x4, offset = 0x4, fixed_abs, tag = 'smem constant byte address 0x4 - core index']
  #allocation1 [shape = 'u32[72,128]{1,0:T(1,128)}', space=vmem, size = 0x9000, scoped, tag = 'internal scratch']
  %s0 = inlined_call_operand.vmem [shape: f32[2,256,128], index: 0, kind: input, shape index: {}]
  %s1 = inlined_call_operand.hbm [shape: f32[2,8,256], index: 1, kind: input, shape index: {}]
  %s2 = inlined_call_operand.vmem [shape: f32[2,256,1], index: 2, kind: input, shape index: {}]
  %s3 = inlined_call_operand.vmem [shape: f32[3], index: 3, kind: input, shape index: {}]
  %s4 = inlined_call_operand.hbm [shape: f32[2,256,128], index: 4, kind: output, shape index: {0}]
  %s5 = inlined_call_operand.hbm [shape: f32[2,1,128], index: 5, kind: output, shape index: {1}]
  %6 = xla_tuple %s4, %s5
  %s7 = sld [smem:[#allocation0]]
  $region65: #{tpu_custom_call.1} parent=0
    _
  %s9 = ssub.s32 1, %s7
  %s10 = scalar_select 0, %s9, %s7
  $region1: #{tpu_custom_call.1} parent=0
    #allocation2 [shape = 'u8[16384]{0}', space=vmem, size = 0x4000, scoped, tag = 'input window, operand 1']
    #allocation3 [shape = 's32[2]{0}', space=sflag, size = 0x8, scoped, tag = 'scoped memory for tpu_custom_call.1']
    #allocation4 [shape = 's32[2]{0}', space=sflag, size = 0x8, scoped, tag = 'scoped memory for tpu_custom_call.1']
    #allocation5 [shape = 's32[2]{0}', space=sflag, size = 0x8, scoped, tag = 'scoped memory for tpu_custom_call.1']
    #allocation6 [shape = 'u8[512]{0}', space=smem, size = 0x200, scoped, tag = 'input window, operand 3, single buffered']
    #allocation7 [shape = 'u8[262144]{0}', space=vmem, size = 0x40000, scoped, tag = 'output window, operand 0']
    #allocation8 [shape = 'u8[1024]{0}', space=vmem, size = 0x400, scoped, tag = 'output window, operand 1']
    #allocation9 [shape = 's32[2]{0}', space=sflag, size = 0x8, scoped, tag = 'scoped memory for tpu_custom_call.1']
    %11 = vsyncpa [#allocation3], 0
    %s12 = scalar_lea.sflag [#allocation3], 1
    %13 = vsyncpa %s12, 0
    %14 = vsyncpa [#allocation5], 0
    %15 = vsyncpa [#allocation4], 0
    %s16 = scalar_lea.sflag [#allocation4], 1
    %17 = vsyncpa %s16, 0
    %18 = vsyncpa [#allocation9], 0
    %s19 = scalar_lea.sflag [#allocation9], 1
    %20 = vsyncpa %s19, 0
    loop: start=0, step=1, limit=4
    $region2: #{tpu_custom_call.1} parent=1 // loop_pre_header
      _
    $region3: #{tpu_custom_call.1} parent=1 // loop_header
      %s22 = sphi 0, %s26
      %p23 = scmp.ge.s32.totalorder %s22, 4
      %s29 = sphi 0, %s41
      %s30 = sphi 0, %s37
      %s31 = sphi 0, %s29
      %s32 = sphi 0, %s30
      %s33 = sphi 0, %s31
      %s34 = sphi 0, %s32
      %s46 = sphi 0, %s48
      %s49 = sphi 0, %s46
      %s50 = sphi 0, %s49
      %s66 = sphi 0, %s50
      %s72 = sphi 0, %s74
      %s75 = sphi 0, %s72
      %s76 = sphi 0, %s75
      %s92 = sphi 0, %s76
      %s98 = sphi 0, %s100
      %s101 = sphi 0, %s98
      %s102 = sphi 0, %s101
      %s118 = sphi 0, %s102
      %s122 = sphi 0, %s122
      %s124 = sphi 0, %s122
      %s125 = sphi 0, %s124
      %s139 = sphi 0, %s125
      %s147 = sphi 0, %s149
      %s150 = sphi 0, %s147
      %s151 = sphi 0, %s150
      %s167 = sphi 0, %s151
      %s175 = sphi 0, %s177
      %s178 = sphi 0, %s175
      %s179 = sphi 0, %s178
      %s195 = sphi 0, %s179
    $region4: #{tpu_custom_call.1} parent=1 // loop_header_branch
      %25 = sbr.rel (%p23) target = $region8
    $region5: #{tpu_custom_call.1} parent=1 // loop_body
      %s27 = ssub.s32 %s22, 1
      %s28 = ssub.s32 %s22, 2
      %s35 = sadd.s32 1, %s30
      %p36 = scmp.ge.s32.totalorder %s35, 1
      %s37 = scalar_select %p36, 0, %s35
      %s38 = sadd.s32 1, %s29
      %s39 = scalar_select %p36, %s38, %s29
      %p40 = scmp.ge.s32.totalorder %s39, 2
      %s41 = scalar_select %p40, 0, %s39
      %s42 = ssub.s32 %s29, %s41
      %s43 = ssub.s32 %s30, %s37
      %s44 = sor.u32 %s42, %s43
      %p45 = scmp.eq.s32.totalorder %s44, 0
      %s47 = sadd.s32 %s46, 1
      %s48 = scalar_select %p45, %s46, %s47
      %p51 = pneg %p45
      %p52 = scmp.eq.s32.totalorder %s22, 1
      %p53 = por %p51, %p52
      %p54 = scmp.ne.s32.totalorder %s46, %s49
      %p55 = scmp.eq.s32.totalorder %s22, 0
      %p56 = por %p54, %p55
      %p57 = scmp.ne.s32.totalorder %s46, %s49
      %p58 = scmp.eq.s32.totalorder %s27, 1
      %p59 = por %p57, %p58
      %p60 = scmp.ne.s32.totalorder %s49, %s50
      %p61 = scmp.eq.s32.totalorder %s27, 0
      %p62 = por %p60, %p61
      %p63 = scmp.ne.s32.totalorder %s49, %s50
      %p64 = scmp.eq.s32.totalorder %s28, 1
      %p65 = por %p63, %p64
      %p67 = scmp.ne.s32.totalorder %s50, %s66
      %p68 = scmp.eq.s32.totalorder %s28, 0
      %p69 = por %p67, %p68
      %s70 = ssub.s32 %s29, %s41
      %p71 = scmp.eq.s32.totalorder %s70, 0
      %s73 = sadd.s32 %s72, 1
      %s74 = scalar_select %p71, %s72, %s73
      %p77 = pneg %p71
      %p78 = scmp.eq.s32.totalorder %s22, 1
      %p79 = por %p77, %p78
      %p80 = scmp.ne.s32.totalorder %s72, %s75
      %p81 = scmp.eq.s32.totalorder %s22, 0
      %p82 = por %p80, %p81
      %p83 = scmp.ne.s32.totalorder %s72, %s75
      %p84 = scmp.eq.s32.totalorder %s27, 1
      %p85 = por %p83, %p84
      %p86 = scmp.ne.s32.totalorder %s75, %s76
      %p87 = scmp.eq.s32.totalorder %s27, 0
      %p88 = por %p86, %p87
      %p89 = scmp.ne.s32.totalorder %s75, %s76
      %p90 = scmp.eq.s32.totalorder %s28, 1
      %p91 = por %p89, %p90
      %p93 = scmp.ne.s32.totalorder %s76, %s92
      %p94 = scmp.eq.s32.totalorder %s28, 0
      %p95 = por %p93, %p94
      %s96 = ssub.s32 %s29, %s41
      %p97 = scmp.eq.s32.totalorder %s96, 0
      %s99 = sadd.s32 %s98, 1
      %s100 = scalar_select %p97, %s98, %s99
      %p103 = pneg %p97
      %p104 = scmp.eq.s32.totalorder %s22, 1
      %p105 = por %p103, %p104
      %p106 = scmp.ne.s32.totalorder %s98, %s101
      %p107 = scmp.eq.s32.totalorder %s22, 0
      %p108 = por %p106, %p107
      %p109 = scmp.ne.s32.totalorder %s98, %s101
      %p110 = scmp.eq.s32.totalorder %s27, 1
      %p111 = por %p109, %p110
      %p112 = scmp.ne.s32.totalorder %s101, %s102
      %p113 = scmp.eq.s32.totalorder %s27, 0
      %p114 = por %p112, %p113
      %p115 = scmp.ne.s32.totalorder %s101, %s102
      %p116 = scmp.eq.s32.totalorder %s28, 1
      %p117 = por %p115, %p116
      %p119 = scmp.ne.s32.totalorder %s102, %s118
      %p120 = scmp.eq.s32.totalorder %s28, 0
      %p121 = por %p119, %p120
      %s123 = sadd.s32 %s122, 1
      %p126 = scmp.eq.s32.totalorder %s22, 1
      %p127 = scmp.ne.s32.totalorder %s122, %s124
      %p128 = scmp.eq.s32.totalorder %s22, 0
      %p129 = por %p127, %p128
      %p130 = scmp.ne.s32.totalorder %s122, %s124
      %p131 = scmp.eq.s32.totalorder %s27, 1
      %p132 = por %p130, %p131
      %p133 = scmp.ne.s32.totalorder %s124, %s125
      %p134 = scmp.eq.s32.totalorder %s27, 0
      %p135 = por %p133, %p134
      %p136 = scmp.ne.s32.totalorder %s124, %s125
      %p137 = scmp.eq.s32.totalorder %s28, 1
      %p138 = por %p136, %p137
      %p140 = scmp.ne.s32.totalorder %s125, %s139
      %p141 = scmp.eq.s32.totalorder %s28, 0
      %p142 = por %p140, %p141
      %s143 = ssub.s32 %s29, %s41
      %s144 = ssub.s32 %s30, %s37
      %s145 = sor.u32 %s143, %s144
      %p146 = scmp.eq.s32.totalorder %s145, 0
      %s148 = sadd.s32 %s147, 1
      %s149 = scalar_select %p146, %s147, %s148
      %p152 = pneg %p146
      %p153 = scmp.eq.s32.totalorder %s22, 1
      %p154 = por %p152, %p153
      %p155 = scmp.ne.s32.totalorder %s147, %s150
      %p156 = scmp.eq.s32.totalorder %s22, 0
      %p157 = por %p155, %p156
      %p158 = scmp.ne.s32.totalorder %s147, %s150
      %p159 = scmp.eq.s32.totalorder %s27, 1
      %p160 = por %p158, %p159
      %p161 = scmp.ne.s32.totalorder %s150, %s151
      %p162 = scmp.eq.s32.totalorder %s27, 0
      %p163 = por %p161, %p162
      %p164 = scmp.ne.s32.totalorder %s150, %s151
      %p165 = scmp.eq.s32.totalorder %s28, 1
      %p166 = por %p164, %p165
      %p168 = scmp.ne.s32.totalorder %s151, %s167
      %p169 = scmp.eq.s32.totalorder %s28, 0
      %p170 = por %p168, %p169
      %s171 = ssub.s32 %s29, %s41
      %s172 = ssub.s32 %s30, %s37
      %s173 = sor.u32 %s171, %s172
      %p174 = scmp.eq.s32.totalorder %s173, 0
      %s176 = sadd.s32 %s175, 1
      %s177 = scalar_select %p174, %s175, %s176
      %p180 = pneg %p174
      %p181 = scmp.eq.s32.totalorder %s22, 1
      %p182 = por %p180, %p181
      %p183 = scmp.ne.s32.totalorder %s175, %s178
      %p184 = scmp.eq.s32.totalorder %s22, 0
      %p185 = por %p183, %p184
      %p186 = scmp.ne.s32.totalorder %s175, %s178
      %p187 = scmp.eq.s32.totalorder %s27, 1
      %p188 = por %p186, %p187
      %p189 = scmp.ne.s32.totalorder %s178, %s179
      %p190 = scmp.eq.s32.totalorder %s27, 0
      %p191 = por %p189, %p190
      %p192 = scmp.ne.s32.totalorder %s178, %s179
      %p193 = scmp.eq.s32.totalorder %s28, 1
      %p194 = por %p192, %p193
      %p196 = scmp.ne.s32.totalorder %s179, %s195
      %p197 = scmp.eq.s32.totalorder %s28, 0
      %p198 = por %p196, %p197
      %p199 = scmp.le.s32.totalorder 1, %s22
      %p200 = scmp.lt.s32.totalorder %s22, 3
      %p201 = pnand %p199, %p200
      %p202 = pneg %p201
      // Predicated region
      $region9: #{tpu_custom_call.1} parent=5 // pred_check
        _
      $region10: #{tpu_custom_call.1} parent=5 // pred_check_branch
        %204 = sbr.rel (%p201) target = $region12
      $region11: #{tpu_custom_call.1} parent=5 // pred_region
        %s205 = ssub.s32 %s22, 1
        // Predicated region
        $region13: #{tpu_custom_call.1} parent=11 // pred_check
          %p206 = pneg %p135
        $region14: #{tpu_custom_call.1} parent=11 // pred_check_branch
          %208 = sbr.rel (%p206) target = $region16
        $region15: #{tpu_custom_call.1} parent=11 // pred_region
          %210 = vsyncadd [#allocation5], 0
          %s212 = sshll.u32 %s3, 4
          %s213 = int_to_ptr.vmem [resolvable:$true] %s212
          %215 = dma.vmem_to_smem %s213, 16, [#allocation6], [#allocation5]
        $region16: #{tpu_custom_call.1} parent=11 // pred_fallthru
          _
      $region12: #{tpu_custom_call.1} parent=5 // pred_fallthru
        _
      %p216 = scmp.lt.s32.totalorder %s22, 2
      // Predicated region
      $region17: #{tpu_custom_call.1} parent=5 // pred_check
        %p217 = pneg %p216
      $region18: #{tpu_custom_call.1} parent=5 // pred_check_branch
        %219 = sbr.rel (%p217) target = $region20
      $region19: #{tpu_custom_call.1} parent=5 // pred_region
        // Predicated region
        $region21: #{tpu_custom_call.1} parent=19 // pred_check
          %p220 = pneg %p56
        $region22: #{tpu_custom_call.1} parent=19 // pred_check_branch
          %222 = sbr.rel (%p220) target = $region24
        $region23: #{tpu_custom_call.1} parent=19 // pred_region
          %p223 = scmp.lt.s32.totalorder %s29, 1
          %s224 = scalar_select %p223, %s29, 1
          %p225 = scmp.lt.s32.totalorder %s30, 0
          %s226 = scalar_select %p225, %s30, 0
          %s227 = smul.addr %s224, 32
          %s228 = sadd.s32 %s226, %s227
          %s229 = smul.addr %s228, 8
          %s230 = scalar_lea.vmem %s0, %s229
        $region24: #{tpu_custom_call.1} parent=19 // pred_fallthru
          _
        // Predicated region
        $region25: #{tpu_custom_call.1} parent=19 // pred_check
          %p231 = pneg %p82
        $region26: #{tpu_custom_call.1} parent=19 // pred_check_branch
          %233 = sbr.rel (%p231) target = $region28
        $region27: #{tpu_custom_call.1} parent=19 // pred_region
          %s234 = sand.u32 %s72, 1
          %s235 = scalar_lea.sflag [#allocation3], %s234
          %s236 = sand.u32 %s72, 1
          %s237 = smul.addr %s236, 16
          %s238 = scalar_lea.vmem [#allocation2], %s237
          %240 = vsyncadd %s235, 0
          %s241 = smul.addr %s29, 2
          %s242 = smul.addr %s241, 8
          %s243 = scalar_lea.hbm %s1, %s242
          %s245 = sshll.u32 %s243, 4
          %s246 = int_to_ptr.hbm [resolvable:$true] %s245
          %s247 = sshll.u32 %s238, 4
          %s248 = int_to_ptr.vmem [resolvable:$true] %s247
          %250 = dma.hbm_to_vmem [thread:$0]  %s246, 256, %s248, %s235
        $region28: #{tpu_custom_call.1} parent=19 // pred_fallthru
          _
        // Predicated region
        $region29: #{tpu_custom_call.1} parent=19 // pred_check
          %p251 = pneg %p108
        $region30: #{tpu_custom_call.1} parent=19 // pred_check_branch
          %253 = sbr.rel (%p251) target = $region32
        $region31: #{tpu_custom_call.1} parent=19 // pred_region
          %p254 = scmp.lt.s32.totalorder %s29, 1
          %s255 = scalar_select %p254, %s29, 1
          %s256 = smul.addr %s255, 32
          %s257 = smul.addr %s256, 8
          %s258 = scalar_lea.vmem %s2, %s257
        $region32: #{tpu_custom_call.1} parent=19 // pred_fallthru
          _
      $region20: #{tpu_custom_call.1} parent=5 // pred_fallthru
        _
      %p259 = scmp.le.s32.totalorder 1, %s22
      %p260 = scmp.lt.s32.totalorder %s22, 3
      %p261 = pnand %p259, %p260
      %p262 = pneg %p261
      // Predicated region
      $region33: #{tpu_custom_call.1} parent=5 // pred_check
        _
      $region34: #{tpu_custom_call.1} parent=5 // pred_check_branch
        %264 = sbr.rel (%p261) target = $region36
      $region35: #{tpu_custom_call.1} parent=5 // pred_region
        %s265 = ssub.s32 %s22, 1
        %s266 = sand.u32 %s75, 1
        %s267 = scalar_lea.sflag [#allocation3], %s266
        %s268 = sand.u32 %s75, 1
        %s269 = smul.addr %s268, 16
        %s270 = scalar_lea.vmem [#allocation2], %s269
        // Predicated region
        $region37: #{tpu_custom_call.1} parent=35 // pred_check
          %p271 = pneg %p88
        $region38: #{tpu_custom_call.1} parent=35 // pred_check_branch
          %273 = sbr.rel (%p271) target = $region40
        $region39: #{tpu_custom_call.1} parent=35 // pred_region
          %275 = dma.done %s267, 256
        $region40: #{tpu_custom_call.1} parent=35 // pred_fallthru
          _
        // Predicated region
        $region41: #{tpu_custom_call.1} parent=35 // pred_check
          %p276 = pneg %p135
        $region42: #{tpu_custom_call.1} parent=35 // pred_check_branch
          %278 = sbr.rel (%p276) target = $region44
        $region43: #{tpu_custom_call.1} parent=35 // pred_region
          %280 = dma.done [#allocation5], 16
        $region44: #{tpu_custom_call.1} parent=35 // pred_fallthru
          _
        %281 = sfence
        %p282 = scmp.lt.s32.totalorder %s31, 1
        %s283 = scalar_select %p282, %s31, 1
        %p284 = scmp.lt.s32.totalorder %s32, 0
        %s285 = scalar_select %p284, %s32, 0
        %s286 = smul.addr %s283, 32
        %s287 = sadd.s32 %s285, %s286
        %s288 = smul.addr %s287, 8
        %s289 = scalar_lea.vmem %s0, %s288
        %p290 = pneg %p62
        %p291 = pneg %p59
        %s292 = sand.u32 %s75, 1
        %s293 = scalar_lea.sflag [#allocation3], %s292
        %s294 = sand.u32 %s75, 1
        %s295 = smul.addr %s294, 16
        %s296 = scalar_lea.vmem [#allocation2], %s295
        %p297 = pneg %p88
        %p298 = pneg %p85
        %p299 = scmp.lt.s32.totalorder %s31, 1
        %s300 = scalar_select %p299, %s31, 1
        %s301 = smul.addr %s300, 32
        %s302 = smul.addr %s301, 8
        %s303 = scalar_lea.vmem %s2, %s302
        %p304 = pneg %p114
        %p305 = pneg %p111
        %p306 = pneg %p135
        %p307 = pneg %p132
        %p308 = pneg %p163
        %p309 = pneg %p160
        %s310 = sand.u32 %s150, 1
        %s311 = scalar_lea.sflag [#allocation4], %s310
        %s312 = sand.u32 %s150, 1
        %s313 = smul.addr %s312, 256
        %s314 = scalar_lea.vmem [#allocation7], %s313
        %p315 = pneg %p191
        %p316 = pneg %p188
        %s317 = sand.u32 %s178, 1
        %s318 = scalar_lea.sflag [#allocation9], %s317
        %s319 = sand.u32 %s178, 1
        %s320 = scalar_lea.vmem [#allocation8], %s319
        %p321 = scmp.lt.s32.totalorder %s31, 1
        %s322 = scalar_select %p321, %s31, 1
        %p323 = scmp.lt.s32.totalorder %s32, 0
        %s324 = scalar_select %p323, %s32, 0
        %s325 = smul.addr %s322, 32
        %s326 = sadd.s32 %s324, %s325
        %s327 = smul.addr %s326, 8
        %s328 = scalar_lea.vmem %s0, %s327
        %p329 = scmp.lt.s32.totalorder %s31, 1
        %s330 = scalar_select %p329, %s31, 1
        %s331 = smul.addr %s330, 32
        %s332 = smul.addr %s331, 8
        %s333 = scalar_lea.vmem %s2, %s332
        %v334 = vld [vmem:[%s328] sm:$0xff]
        %v335 = vld [vmem:[%s328 + $0x8] sm:$0xff]
        %v336 = vld [vmem:[%s328 + $0x10] sm:$0xff]
        %v337 = vld [vmem:[%s328 + $0x18] sm:$0xff]
        %v338 = vld [vmem:[%s328 + $0x20] sm:$0xff]
        %v339 = vld [vmem:[%s328 + $0x28] sm:$0xff]
        %v340 = vld [vmem:[%s328 + $0x30] sm:$0xff]
        %v341 = vld [vmem:[%s328 + $0x38] sm:$0xff]
        %v342 = vld [vmem:[%s328 + $0x40] sm:$0xff]
        %v343 = vld [vmem:[%s328 + $0x48] sm:$0xff]
        %v344 = vld [vmem:[%s328 + $0x50] sm:$0xff]
        %v345 = vld [vmem:[%s328 + $0x58] sm:$0xff]
        %v346 = vld [vmem:[%s328 + $0x60] sm:$0xff]
        %v347 = vld [vmem:[%s328 + $0x68] sm:$0xff]
        %v348 = vld [vmem:[%s328 + $0x70] sm:$0xff]
        %v349 = vld [vmem:[%s328 + $0x78] sm:$0xff]
        %v350 = vld [vmem:[%s328 + $0x80] sm:$0xff]
        %v351 = vld [vmem:[%s328 + $0x88] sm:$0xff]
        %v352 = vld [vmem:[%s328 + $0x90] sm:$0xff]
        %v353 = vld [vmem:[%s328 + $0x98] sm:$0xff]
        %v354 = vld [vmem:[%s328 + $0xa0] sm:$0xff]
        %v355 = vld [vmem:[%s328 + $0xa8] sm:$0xff]
        %v356 = vld [vmem:[%s328 + $0xb0] sm:$0xff]
        %v357 = vld [vmem:[%s328 + $0xb8] sm:$0xff]
        %v358 = vld [vmem:[%s328 + $0xc0] sm:$0xff]
        %v359 = vld [vmem:[%s328 + $0xc8] sm:$0xff]
        %v360 = vld [vmem:[%s328 + $0xd0] sm:$0xff]
        %v361 = vld [vmem:[%s328 + $0xd8] sm:$0xff]
        %v362 = vld [vmem:[%s328 + $0xe0] sm:$0xff]
        %v363 = vld [vmem:[%s328 + $0xe8] sm:$0xff]
        %v364 = vld [vmem:[%s328 + $0xf0] sm:$0xff]
        %v365 = vld [vmem:[%s328 + $0xf8] sm:$0xff]
        %v366 = vld [vmem:[%s270] sm:$0xff]
        %v367 = vld [vmem:[%s270 + $0x8] sm:$0xff]
        %368 = vmatpush.msra.mxu0 %v349
        %369 = vmatpush.msra.mxu0 %v348
        %370 = vmatpush.msra.mxu0 %v347
        %371 = vmatpush.msra.mxu0 %v346
        %372 = vmatpush.msra.mxu0 %v345
        %373 = vmatpush.msra.mxu0 %v344
        %374 = vmatpush.msra.mxu0 %v343
        %375 = vmatpush.msra.mxu0 %v342
        %376 = vmatpush.msra.mxu0 %v341
        %377 = vmatpush.msra.mxu0 %v340
        %378 = vmatpush.msra.mxu0 %v339
        %379 = vmatpush.msra.mxu0 %v338
        %380 = vmatpush.msra.mxu0 %v337
        %381 = vmatpush.msra.mxu0 %v336
        %382 = vmatpush.msra.mxu0 %v335
        %383 = vmatpush.msra.mxu0 %v334
        %384 = vmatmul.f32.gmra.mxu0 %v366
        %v385 = vpop.f32.mrf.mxu0
        %v386 = vadd.f32 0.0, %v385
        %387 = vdwg.mxu0
        %388 = vmatpush.msra.mxu0 %v365
        %389 = vmatpush.msra.mxu0 %v364
        %390 = vmatpush.msra.mxu0 %v363
        %391 = vmatpush.msra.mxu0 %v362
        %392 = vmatpush.msra.mxu0 %v361
        %393 = vmatpush.msra.mxu0 %v360
        %394 = vmatpush.msra.mxu0 %v359
        %395 = vmatpush.msra.mxu0 %v358
        %396 = vmatpush.msra.mxu0 %v357
        %397 = vmatpush.msra.mxu0 %v356
        %398 = vmatpush.msra.mxu0 %v355
        %399 = vmatpush.msra.mxu0 %v354
        %400 = vmatpush.msra.mxu0 %v353
        %401 = vmatpush.msra.mxu0 %v352
        %402 = vmatpush.msra.mxu0 %v351
        %403 = vmatpush.msra.mxu0 %v350
        %404 = vmatmul.f32.gmra.mxu0 %v367
        %v405 = vpop.f32.mrf.mxu0
        %v406 = vadd.f32 %v386, %v405
        %407 = vdwg.mxu0
        %s408 = sld [smem:[#allocation6]]
        %v409 = vstv %s408
        %v410 = vadd.f32 %v406, %v409
        %v411 = vxor.u32 %v410, 2147483648
        %v412 = vmul.f32 %v411, 1.442695
        %v413 = vpow.pop %v412
        %v414 = vadd.f32 %v413, 1.0
        %v415 = vrcp.pop %v414
        %v416 = vmul.f32 %v414, %v415
        %v417 = vsub.f32 1.0, %v416
        %v418 = vmul.f32 %v415, %v417
        %v419 = vadd.f32 %v415, %v418
        %vm420 = vweird.f32 %v414
        %vm421 = vweird.f32 %v415
        %vm422 = vmor %vm420, %vm421
        %v423 = vsel %vm422, %v415, %v419
        %v424 = vand.u32 2147483647, %v414
        %vm425 = vcmp.eq.f32.partialorder %v424, 8.507059e+37
        %v426 = vand.u32 %v414, 2147483648
        %v427 = vor.u32 1.1754944e-38, %v426
        %v428 = vsel %vm425, %v427, %v423
        %v429 = vmul.f32 1.0, %v428
        %v431 = vrot.slane %v406, 3
        %v433 = vmul.f32 %v429, %v431
        %v435 = vrot.slane %v433, 7
        %v437 = vadd.f32 %v406, %v435
        %s438 = sld [smem:[#allocation6 + $0x1]]
        %v439 = vstv %s438
        %v440 = vadd.f32 %v437, %v439
        %v441 = vrot.slane %v406, 4
        %v443 = vmul.f32 %v429, %v441
        %v445 = vrot.slane %v443, 6
        %v447 = vadd.f32 %v406, %v445
        %s448 = sld [smem:[#allocation6 + $0x2]]
        %v449 = vstv %s448
        %v450 = vadd.f32 %v447, %v449
        %v452 = vrot.slane %v450, 1
        %v454 = vmax.f32 %v440, %v452
        %v455 = vsub.f32 %v440, %v454
        %v456 = vmul.f32 %v455, 1.442695
        %v457 = vpow.pop %v456
        %v459 = vrot.slane %v454, 7
        %v461 = vsub.f32 %v450, %v459
        %v462 = vmul.f32 %v461, 1.442695
        %v463 = vpow.pop %v462
        %v465 = vrot.slane %v463, 1
        %v467 = vadd.f32 %v457, %v465
        %v468 = vrcp.pop %v467
        %v469 = vmul.f32 %v467, %v468
        %v470 = vsub.f32 1.0, %v469
        %v471 = vmul.f32 %v468, %v470
        %v472 = vadd.f32 %v468, %v471
        %vm473 = vweird.f32 %v467
        %vm474 = vweird.f32 %v468
        %vm475 = vmor %vm473, %vm474
        %v476 = vsel %vm475, %v468, %v472
        %v477 = vand.u32 2147483647, %v467
        %vm478 = vcmp.eq.f32.partialorder %v477, 8.507059e+37
        %v479 = vand.u32 %v467, 2147483648
        %v480 = vor.u32 1.1754944e-38, %v479
        %v481 = vsel %vm478, %v480, %v476
        %v482 = vmul.f32 %v457, %v481
        %v484 = vrot.slane %v481, 7
        %v486 = vmul.f32 %v463, %v484
        %v487 = vld [vmem:[%s333] sm:$0xff]
        %v488 = vld [vmem:[%s333 + $0x8] sm:$0xff]
        %v489 = vld [vmem:[%s333 + $0x10] sm:$0xff]
        %v490 = vld [vmem:[%s333 + $0x18] sm:$0xff]
        %v491 = vld [vmem:[%s333 + $0x20] sm:$0xff]
        %v492 = vld [vmem:[%s333 + $0x28] sm:$0xff]
        %v493 = vld [vmem:[%s333 + $0x30] sm:$0xff]
        %v494 = vld [vmem:[%s333 + $0x38] sm:$0xff]
        %v495 = vld [vmem:[%s333 + $0x40] sm:$0xff]
        %v496 = vld [vmem:[%s333 + $0x48] sm:$0xff]
        %v497 = vld [vmem:[%s333 + $0x50] sm:$0xff]
        %v498 = vld [vmem:[%s333 + $0x58] sm:$0xff]
        %v499 = vld [vmem:[%s333 + $0x60] sm:$0xff]
        %v500 = vld [vmem:[%s333 + $0x68] sm:$0xff]
        %v501 = vld [vmem:[%s333 + $0x70] sm:$0xff]
        %v502 = vld [vmem:[%s333 + $0x78] sm:$0xff]
        %v503 = vld [vmem:[%s333 + $0x80] sm:$0xff]
        %v504 = vld [vmem:[%s333 + $0x88] sm:$0xff]
        %v505 = vld [vmem:[%s333 + $0x90] sm:$0xff]
        %v506 = vld [vmem:[%s333 + $0x98] sm:$0xff]
        %v507 = vld [vmem:[%s333 + $0xa0] sm:$0xff]
        %v508 = vld [vmem:[%s333 + $0xa8] sm:$0xff]
        %v509 = vld [vmem:[%s333 + $0xb0] sm:$0xff]
        %v510 = vld [vmem:[%s333 + $0xb8] sm:$0xff]
        %v511 = vld [vmem:[%s333 + $0xc0] sm:$0xff]
        %v512 = vld [vmem:[%s333 + $0xc8] sm:$0xff]
        %v513 = vld [vmem:[%s333 + $0xd0] sm:$0xff]
        %v514 = vld [vmem:[%s333 + $0xd8] sm:$0xff]
        %v515 = vld [vmem:[%s333 + $0xe0] sm:$0xff]
        %v516 = vld [vmem:[%s333 + $0xe8] sm:$0xff]
        %v517 = vld [vmem:[%s333 + $0xf0] sm:$0xff]
        %v518 = vld [vmem:[%s333 + $0xf8] sm:$0xff]
        %520 = vset.pattern.permute.xlu0 0
        %521 = vperm.xlu0 %520, %v487
        %v522 = vpop.permute.xlu0 %521
        %525 = vset.pattern.permute.xlu0 0
        %526 = vperm.xlu0 %525, %v488
        %v527 = vpop.permute.xlu0 %526
        %530 = vset.pattern.permute.xlu0 0
        %531 = vperm.xlu0 %530, %v489
        %v532 = vpop.permute.xlu0 %531
        %535 = vset.pattern.permute.xlu0 0
        %536 = vperm.xlu0 %535, %v490
        %v537 = vpop.permute.xlu0 %536
        %540 = vset.pattern.permute.xlu0 0
        %541 = vperm.xlu0 %540, %v491
        %v542 = vpop.permute.xlu0 %541
        %545 = vset.pattern.permute.xlu0 0
        %546 = vperm.xlu0 %545, %v492
        %v547 = vpop.permute.xlu0 %546
        %550 = vset.pattern.permute.xlu0 0
        %551 = vperm.xlu0 %550, %v493
        %v552 = vpop.permute.xlu0 %551
        %555 = vset.pattern.permute.xlu0 0
        %556 = vperm.xlu0 %555, %v494
        %v557 = vpop.permute.xlu0 %556
        %560 = vset.pattern.permute.xlu0 0
        %561 = vperm.xlu0 %560, %v495
        %v562 = vpop.permute.xlu0 %561
        %565 = vset.pattern.permute.xlu0 0
        %566 = vperm.xlu0 %565, %v496
        %v567 = vpop.permute.xlu0 %566
        %570 = vset.pattern.permute.xlu0 0
        %571 = vperm.xlu0 %570, %v497
        %v572 = vpop.permute.xlu0 %571
        %575 = vset.pattern.permute.xlu0 0
        %576 = vperm.xlu0 %575, %v498
        %v577 = vpop.permute.xlu0 %576
        %580 = vset.pattern.permute.xlu0 0
        %581 = vperm.xlu0 %580, %v499
        %v582 = vpop.permute.xlu0 %581
        %585 = vset.pattern.permute.xlu0 0
        %586 = vperm.xlu0 %585, %v500
        %v587 = vpop.permute.xlu0 %586
        %590 = vset.pattern.permute.xlu0 0
        %591 = vperm.xlu0 %590, %v501
        %v592 = vpop.permute.xlu0 %591
        %595 = vset.pattern.permute.xlu0 0
        %596 = vperm.xlu0 %595, %v502
        %v597 = vpop.permute.xlu0 %596
        %600 = vset.pattern.permute.xlu0 0
        %601 = vperm.xlu0 %600, %v503
        %v602 = vpop.permute.xlu0 %601
        %605 = vset.pattern.permute.xlu0 0
        %606 = vperm.xlu0 %605, %v504
        %v607 = vpop.permute.xlu0 %606
        %610 = vset.pattern.permute.xlu0 0
        %611 = vperm.xlu0 %610, %v505
        %v612 = vpop.permute.xlu0 %611
        %615 = vset.pattern.permute.xlu0 0
        %616 = vperm.xlu0 %615, %v506
        %v617 = vpop.permute.xlu0 %616
        %620 = vset.pattern.permute.xlu0 0
        %621 = vperm.xlu0 %620, %v507
        %v622 = vpop.permute.xlu0 %621
        %625 = vset.pattern.permute.xlu0 0
        %626 = vperm.xlu0 %625, %v508
        %v627 = vpop.permute.xlu0 %626
        %630 = vset.pattern.permute.xlu0 0
        %631 = vperm.xlu0 %630, %v509
        %v632 = vpop.permute.xlu0 %631
        %635 = vset.pattern.permute.xlu0 0
        %636 = vperm.xlu0 %635, %v510
        %v637 = vpop.permute.xlu0 %636
        %640 = vset.pattern.permute.xlu0 0
        %641 = vperm.xlu0 %640, %v511
        %v642 = vpop.permute.xlu0 %641
        %645 = vset.pattern.permute.xlu0 0
        %646 = vperm.xlu0 %645, %v512
        %v647 = vpop.permute.xlu0 %646
        %650 = vset.pattern.permute.xlu0 0
        %651 = vperm.xlu0 %650, %v513
        %v652 = vpop.permute.xlu0 %651
        %655 = vset.pattern.permute.xlu0 0
        %656 = vperm.xlu0 %655, %v514
        %v657 = vpop.permute.xlu0 %656
        %660 = vset.pattern.permute.xlu0 0
        %661 = vperm.xlu0 %660, %v515
        %v662 = vpop.permute.xlu0 %661
        %665 = vset.pattern.permute.xlu0 0
        %666 = vperm.xlu0 %665, %v516
        %v667 = vpop.permute.xlu0 %666
        %670 = vset.pattern.permute.xlu0 0
        %671 = vperm.xlu0 %670, %v517
        %v672 = vpop.permute.xlu0 %671
        %675 = vset.pattern.permute.xlu0 0
        %676 = vperm.xlu0 %675, %v518
        %v677 = vpop.permute.xlu0 %676
        %v679 = vperm.slane %v482, 1
        %v680 = vmul.f32 %v522, %v679
        %v681 = vmul.f32 %v527, %v679
        %v682 = vmul.f32 %v532, %v679
        %v683 = vmul.f32 %v537, %v679
        %v684 = vmul.f32 %v542, %v679
        %v685 = vmul.f32 %v547, %v679
        %v686 = vmul.f32 %v552, %v679
        %v687 = vmul.f32 %v557, %v679
        %v688 = vmul.f32 %v562, %v679
        %v689 = vmul.f32 %v567, %v679
        %v690 = vmul.f32 %v572, %v679
        %v691 = vmul.f32 %v577, %v679
        %v692 = vmul.f32 %v582, %v679
        %v693 = vmul.f32 %v587, %v679
        %v694 = vmul.f32 %v592, %v679
        %v695 = vmul.f32 %v597, %v679
        %v696 = vmul.f32 %v602, %v679
        %v697 = vmul.f32 %v607, %v679
        %v698 = vmul.f32 %v612, %v679
        %v699 = vmul.f32 %v617, %v679
        %v700 = vmul.f32 %v622, %v679
        %v701 = vmul.f32 %v627, %v679
        %v702 = vmul.f32 %v632, %v679
        %v703 = vmul.f32 %v637, %v679
        %v704 = vmul.f32 %v642, %v679
        %v705 = vmul.f32 %v647, %v679
        %v706 = vmul.f32 %v652, %v679
        %v707 = vmul.f32 %v657, %v679
        %v708 = vmul.f32 %v662, %v679
        %v709 = vmul.f32 %v667, %v679
        %v710 = vmul.f32 %v672, %v679
        %v711 = vmul.f32 %v677, %v679
        %v713 = vrot.slane %v429, 6
        %v715 = vmul.f32 %v486, %v713
        %v716 = vperm.slane %v715, 2
        %v717 = vadd.f32 %v680, %v716
        %v718 = vadd.f32 %v681, %v716
        %v719 = vadd.f32 %v682, %v716
        %v720 = vadd.f32 %v683, %v716
        %v721 = vadd.f32 %v684, %v716
        %v722 = vadd.f32 %v685, %v716
        %v723 = vadd.f32 %v686, %v716
        %v724 = vadd.f32 %v687, %v716
        %v725 = vadd.f32 %v688, %v716
        %v726 = vadd.f32 %v689, %v716
        %v727 = vadd.f32 %v690, %v716
        %v728 = vadd.f32 %v691, %v716
        %v729 = vadd.f32 %v692, %v716
        %v730 = vadd.f32 %v693, %v716
        %v731 = vadd.f32 %v694, %v716
        %v732 = vadd.f32 %v695, %v716
        %v733 = vadd.f32 %v696, %v716
        %v734 = vadd.f32 %v697, %v716
        %v735 = vadd.f32 %v698, %v716
        %v736 = vadd.f32 %v699, %v716
        %v737 = vadd.f32 %v700, %v716
        %v738 = vadd.f32 %v701, %v716
        %v739 = vadd.f32 %v702, %v716
        %v740 = vadd.f32 %v703, %v716
        %v741 = vadd.f32 %v704, %v716
        %v742 = vadd.f32 %v705, %v716
        %v743 = vadd.f32 %v706, %v716
        %v744 = vadd.f32 %v707, %v716
        %v745 = vadd.f32 %v708, %v716
        %v746 = vadd.f32 %v709, %v716
        %v747 = vadd.f32 %v710, %v716
        %v748 = vadd.f32 %v711, %v716
        %v749 = vmul.f32 %v334, %v717
        %v750 = vmul.f32 %v335, %v718
        %v751 = vmul.f32 %v336, %v719
        %v752 = vmul.f32 %v337, %v720
        %v753 = vmul.f32 %v338, %v721
        %v754 = vmul.f32 %v339, %v722
        %v755 = vmul.f32 %v340, %v723
        %v756 = vmul.f32 %v341, %v724
        %v757 = vmul.f32 %v342, %v725
        %v758 = vmul.f32 %v343, %v726
        %v759 = vmul.f32 %v344, %v727
        %v760 = vmul.f32 %v345, %v728
        %v761 = vmul.f32 %v346, %v729
        %v762 = vmul.f32 %v347, %v730
        %v763 = vmul.f32 %v348, %v731
        %v764 = vmul.f32 %v349, %v732
        %v765 = vmul.f32 %v350, %v733
        %v766 = vmul.f32 %v351, %v734
        %v767 = vmul.f32 %v352, %v735
        %v768 = vmul.f32 %v353, %v736
        %v769 = vmul.f32 %v354, %v737
        %v770 = vmul.f32 %v355, %v738
        %v771 = vmul.f32 %v356, %v739
        %v772 = vmul.f32 %v357, %v740
        %v773 = vmul.f32 %v358, %v741
        %v774 = vmul.f32 %v359, %v742
        %v775 = vmul.f32 %v360, %v743
        %v776 = vmul.f32 %v361, %v744
        %v777 = vmul.f32 %v362, %v745
        %v778 = vmul.f32 %v363, %v746
        %v779 = vmul.f32 %v364, %v747
        %v780 = vmul.f32 %v365, %v748
        %781 = vst [vmem:[%s314] sm:$0xff] %v749
        %782 = vst [vmem:[%s314 + $0x8] sm:$0xff] %v750
        %783 = vst [vmem:[%s314 + $0x10] sm:$0xff] %v751
        %784 = vst [vmem:[%s314 + $0x18] sm:$0xff] %v752
        %785 = vst [vmem:[%s314 + $0x20] sm:$0xff] %v753
        %786 = vst [vmem:[%s314 + $0x28] sm:$0xff] %v754
        %787 = vst [vmem:[%s314 + $0x30] sm:$0xff] %v755
        %788 = vst [vmem:[%s314 + $0x38] sm:$0xff] %v756
        %789 = vst [vmem:[%s314 + $0x40] sm:$0xff] %v757
        %790 = vst [vmem:[%s314 + $0x48] sm:$0xff] %v758
        %791 = vst [vmem:[%s314 + $0x50] sm:$0xff] %v759
        %792 = vst [vmem:[%s314 + $0x58] sm:$0xff] %v760
        %793 = vst [vmem:[%s314 + $0x60] sm:$0xff] %v761
        %794 = vst [vmem:[%s314 + $0x68] sm:$0xff] %v762
        %795 = vst [vmem:[%s314 + $0x70] sm:$0xff] %v763
        %796 = vst [vmem:[%s314 + $0x78] sm:$0xff] %v764
        %797 = vst [vmem:[%s314 + $0x80] sm:$0xff] %v765
        %798 = vst [vmem:[%s314 + $0x88] sm:$0xff] %v766
        %799 = vst [vmem:[%s314 + $0x90] sm:$0xff] %v767
        %800 = vst [vmem:[%s314 + $0x98] sm:$0xff] %v768
        %801 = vst [vmem:[%s314 + $0xa0] sm:$0xff] %v769
        %802 = vst [vmem:[%s314 + $0xa8] sm:$0xff] %v770
        %803 = vst [vmem:[%s314 + $0xb0] sm:$0xff] %v771
        %804 = vst [vmem:[%s314 + $0xb8] sm:$0xff] %v772
        %805 = vst [vmem:[%s314 + $0xc0] sm:$0xff] %v773
        %806 = vst [vmem:[%s314 + $0xc8] sm:$0xff] %v774
        %807 = vst [vmem:[%s314 + $0xd0] sm:$0xff] %v775
        %808 = vst [vmem:[%s314 + $0xd8] sm:$0xff] %v776
        %809 = vst [vmem:[%s314 + $0xe0] sm:$0xff] %v777
        %810 = vst [vmem:[%s314 + $0xe8] sm:$0xff] %v778
        %811 = vst [vmem:[%s314 + $0xf0] sm:$0xff] %v779
        %812 = vst [vmem:[%s314 + $0xf8] sm:$0xff] %v780
        %813 = vst [vmem:[%s320] sm:$0x1] %v429
        %s814 = sand.u32 %s150, 1
        %s815 = scalar_lea.sflag [#allocation4], %s814
        %s816 = sand.u32 %s150, 1
        %s817 = smul.addr %s816, 256
        %s818 = scalar_lea.vmem [#allocation7], %s817
        %s819 = sand.u32 %s178, 1
        %s820 = scalar_lea.sflag [#allocation9], %s819
        %s821 = sand.u32 %s178, 1
        %s822 = scalar_lea.vmem [#allocation8], %s821
        // Predicated region
        $region45: #{tpu_custom_call.1} parent=35 // pred_check
          %p823 = pneg %p160
        $region46: #{tpu_custom_call.1} parent=35 // pred_check_branch
          %825 = sbr.rel (%p823) target = $region48
        $region47: #{tpu_custom_call.1} parent=35 // pred_region
          %827 = vsyncadd %s815, 0
          %s828 = smul.addr %s31, 32
          %s829 = sadd.s32 %s32, %s828
          %s830 = smul.addr %s829, 8
          %s831 = scalar_lea.hbm %s4, %s830
          %s832 = sshll.u32 %s818, 4
          %s833 = int_to_ptr.vmem [resolvable:$true] %s832
          %s834 = sshll.u32 %s831, 4
          %s835 = int_to_ptr.hbm [resolvable:$true] %s834
          %840 = dma.vmem_to_hbm [thread:$0]  %s833, 4096, %s835, %s815, 128, 128, 8
        $region48: #{tpu_custom_call.1} parent=35 // pred_fallthru
          _
        // Predicated region
        $region49: #{tpu_custom_call.1} parent=35 // pred_check
          %p841 = pneg %p188
        $region50: #{tpu_custom_call.1} parent=35 // pred_check_branch
          %843 = sbr.rel (%p841) target = $region52
        $region51: #{tpu_custom_call.1} parent=35 // pred_region
          %845 = vsyncadd %s820, 0
          %s846 = sadd.s32 %s32, %s31
          %s847 = scalar_lea.hbm %s5, %s846
          %s849 = sshll.u32 %s822, 4
          %s850 = int_to_ptr.vmem [resolvable:$true] %s849
          %s851 = sshll.u32 %s847, 4
          %s852 = int_to_ptr.hbm [resolvable:$true] %s851
          %854 = dma.vmem_to_hbm [thread:$0]  %s850, 16, %s852, %s820
        $region52: #{tpu_custom_call.1} parent=35 // pred_fallthru
          _
      $region36: #{tpu_custom_call.1} parent=5 // pred_fallthru
        _
      %p855 = scmp.le.s32.totalorder 2, %s22
      // Predicated region
      $region53: #{tpu_custom_call.1} parent=5 // pred_check
        %p856 = pneg %p855
      $region54: #{tpu_custom_call.1} parent=5 // pred_check_branch
        %858 = sbr.rel (%p856) target = $region56
      $region55: #{tpu_custom_call.1} parent=5 // pred_region
        %s859 = ssub.s32 %s22, 2
        // Predicated region
        $region57: #{tpu_custom_call.1} parent=55 // pred_check
          %p860 = pneg %p166
        $region58: #{tpu_custom_call.1} parent=55 // pred_check_branch
          %862 = sbr.rel (%p860) target = $region60
        $region59: #{tpu_custom_call.1} parent=55 // pred_region
          %s863 = sand.u32 %s151, 1
          %s864 = scalar_lea.sflag [#allocation4], %s863
          %s865 = sand.u32 %s151, 1
          %s866 = smul.addr %s865, 256
          %s867 = scalar_lea.vmem [#allocation7], %s866
          %869 = dma.done %s864, 4096
        $region60: #{tpu_custom_call.1} parent=55 // pred_fallthru
          _
        // Predicated region
        $region61: #{tpu_custom_call.1} parent=55 // pred_check
          %p870 = pneg %p194
        $region62: #{tpu_custom_call.1} parent=55 // pred_check_branch
          %872 = sbr.rel (%p870) target = $region64
        $region63: #{tpu_custom_call.1} parent=55 // pred_region
          %s873 = sand.u32 %s179, 1
          %s874 = scalar_lea.sflag [#allocation9], %s873
          %s875 = sand.u32 %s179, 1
          %s876 = scalar_lea.vmem [#allocation8], %s875
          %878 = dma.done %s874, 16
        $region64: #{tpu_custom_call.1} parent=55 // pred_fallthru
          _
      $region56: #{tpu_custom_call.1} parent=5 // pred_fallthru
        _
    $region6: #{tpu_custom_call.1} parent=1 // loop_footer
      %s26 = sadd.s32 1, %s22
    $region7: #{tpu_custom_call.1} parent=1 // loop_footer_branch
      %21 = sbr.rel target = $region3
    $region8: #{tpu_custom_call.1} parent=1 // loop_exit
      _
    %879 = vsyncpa [#allocation3], 1
    %s880 = scalar_lea.sflag [#allocation3], 1
    %881 = vsyncpa %s880, 1
    %882 = vsyncpa [#allocation4], 1
    %s883 = scalar_lea.sflag [#allocation4], 1
    %884 = vsyncpa %s883, 1
    %885 = vsyncpa [#allocation9], 1
    %s886 = scalar_lea.sflag [#allocation9], 1
    %887 = vsyncpa %s886, 1
    %888 = vsyncpa [#allocation5], 1
    %s889 = scalar_lea.sflag [#allocation5], 1
    %890 = vsyncpa %s889, 1

</llo_original>
